<compile_context>
chip_gen: v7x
topology: tpu7x:2x2x1
jax: 0.10.0
libtpu: 0.0.40
codegen_flags: <defaults>
</compile_context>

<pallas_src>
import jax
import jax.numpy as jnp
from jax import lax
from jax.experimental import pallas as pl
from jax.experimental.pallas import tpu as pltpu


def _attn_kernel(x_ref, wf_ref, bf_ref, gamma_ref, o_ref, qkv_ref):
    # x_ref:    (1, C, N)   current batch element, channel-major, N on lanes
    # wf_ref:   (CF, C)     fused [Wq_pad; Wk_pad; Wv] projection weight
    # bf_ref:   (CF, 1)     fused bias (broadcast along lanes)
    # gamma_ref:(1, 1)      SMEM scalar
    # o_ref:    (1, C, TQ)  output tile for query rows [t*TQ, (t+1)*TQ)
    # qkv_ref:  (CF, N)     VMEM scratch holding the fused projection for this batch
    t = pl.program_id(1)

    C = o_ref.shape[1]
    TQ = o_ref.shape[2]
    CF = qkv_ref.shape[0]
    CQP = (CF - C) // 2          # sublane-padded query/key channel count (multiple of 8)

    # Fused QKV projection: one (CF, C) @ (C, N) matmul per batch element.
    @pl.when(t == 0)
    def _():
        x = x_ref[0]                                                   # (C, N)
        qkv_ref[...] = (
            jnp.dot(wf_ref[...], x, preferred_element_type=jnp.float32)
            + bf_ref[...]
        )

    qoff = pl.multiple_of(t * TQ, TQ)
    q_t = qkv_ref[0:CQP, pl.ds(qoff, TQ)]                              # (CQP, TQ)
    k = qkv_ref[CQP:2 * CQP, :]                                        # (CQP, N)
    v = qkv_ref[2 * CQP:CF, :]                                         # (C,  N)

    # energy[i, j] = sum_c q[c, i] * k[c, j]  (padded channels are exactly zero)
    energy = lax.dot_general(
        q_t, k, (((0,), (0,)), ((), ())),
        preferred_element_type=jnp.float32,
    )                                                                  # (TQ, N)

    # softmax over keys (last / lane axis), numerically stable
    m = jnp.max(energy, axis=-1, keepdims=True)
    e = jnp.exp(energy - m)
    denom = jnp.sum(e, axis=-1, keepdims=True)
    attn = e * pl.reciprocal(denom, approx=False)                      # (TQ, N)

    # out[c, i] = sum_j v[c, j] * attn[i, j]   (contract key axis of both, no transpose)
    out = lax.dot_general(
        v, attn, (((1,), (1,)), ((), ())),
        preferred_element_type=jnp.float32,
    )                                                                  # (C, TQ)

    # x = gamma * x + x  ==  (gamma + 1) * attention_output   (matches the PyTorch code,
    # which reassigns x before the add, so there is no input residual)
    g = gamma_ref[0, 0]
    out = out * (g + 1.0)

    # FeatureSqueezingLayer(bit_depth=8): floor(x * 256) / 256
    out = jnp.floor(out * 256.0) * (1.0 / 256.0)

    o_ref[0] = out.astype(o_ref.dtype)


def simplified_self_attention(x_nchw, wq, bq, wk, bk, wv, bv, gamma):
    """x_nchw: (B, C, H, W) f32.  wq/wk: (Cq, C), bq/bk: (Cq,), wv: (C, C), bv: (C,),
    gamma: (1,) — i.e. PyTorch 1x1-conv weights with the trailing 1x1 squeezed."""
    B, C, H, W = x_nchw.shape
    N = H * W
    Cq = wq.shape[0]

    # ---- pack fused, sublane-padded QKV projection ------------------------------
    CQ_PAD = max(8, ((Cq + 7) // 8) * 8)
    CF = 2 * CQ_PAD + C

    wf = jnp.zeros((CF, C), jnp.float32)
    wf = wf.at[:Cq].set(wq.astype(jnp.float32))
    wf = wf.at[CQ_PAD:CQ_PAD + Cq].set(wk.astype(jnp.float32))
    wf = wf.at[2 * CQ_PAD:].set(wv.astype(jnp.float32))

    bf = jnp.zeros((CF, 1), jnp.float32)
    bf = bf.at[:Cq, 0].set(bq.astype(jnp.float32))
    bf = bf.at[CQ_PAD:CQ_PAD + Cq, 0].set(bk.astype(jnp.float32))
    bf = bf.at[2 * CQ_PAD:, 0].set(bv.astype(jnp.float32))

    # NCHW -> (B, C, N): a pure reshape (no HBM transpose); N stays the minor axis.
    x_cn = x_nchw.reshape(B, C, N).astype(jnp.float32)

    gamma2 = jnp.reshape(gamma, (1, 1)).astype(jnp.float32)

    # Query-row tiling (lane-dense output blocks).
    TQ = 128 if (N % 128 == 0) else N
    NQT = N // TQ

    flops = B * (2 * N * C * CF + 2 * N * N * CQ_PAD + 2 * N * N * C)
    cost = pl.CostEstimate(
        flops=flops,
        transcendentals=B * N * N,
        bytes_accessed=4 * (2 * B * C * N + CF * C + CF + 1),
    )

    out_cn = pl.pallas_call(
        _attn_kernel,
        out_shape=jax.ShapeDtypeStruct((B, C, N), jnp.float32),
        grid_spec=pltpu.PrefetchScalarGridSpec(
            num_scalar_prefetch=0,
            grid=(B, NQT),
            in_specs=[
                pl.BlockSpec((1, C, N), lambda b, t: (b, 0, 0)),        # x (resident over t)
                pl.BlockSpec((CF, C), lambda b, t: (0, 0)),             # fused W
                pl.BlockSpec((CF, 1), lambda b, t: (0, 0)),             # fused bias
                pl.BlockSpec(memory_space=pltpu.MemorySpace.SMEM),      # gamma scalar
            ],
            out_specs=pl.BlockSpec((1, C, TQ), lambda b, t: (b, 0, t)),
            scratch_shapes=[pltpu.VMEM((CF, N), jnp.float32)],
        ),
        compiler_params=pltpu.CompilerParams(
            dimension_semantics=("parallel", "arbitrary")),
        cost_estimate=cost,
    )(x_cn, wf, bf, gamma2)

    # (B, C, N) -> NCHW: pure reshape, no transpose.
    return out_cn.reshape(B, C, H, W)


def _reference_prequant(x_nchw, wq, bq, wk, bk, wv, bv, gamma):
    """Plain-JAX replica of the PyTorch forward, WITHOUT the final quantization."""
    B, C, H, W = x_nchw.shape
    N = H * W
    x_cn = x_nchw.reshape(B, C, N)
    q = jnp.einsum("oc,bcn->bon", wq, x_cn) + bq[None, :, None]
    k = jnp.einsum("oc,bcn->bon", wk, x_cn) + bk[None, :, None]
    v = jnp.einsum("oc,bcn->bon", wv, x_cn) + bv[None, :, None]
    energy = jnp.einsum("bci,bcj->bij", q, k)
    attn = jax.nn.softmax(energy, axis=-1)
    out = jnp.einsum("bcj,bij->bci", v, attn)
    out = gamma[0] * out + out
    return out.reshape(B, C, H, W)


if __name__ == "__main__":
    key = jax.random.PRNGKey(0)
    B, C, H, W = 2, 16, 16, 16          # in_channels=16 -> query/key channels = 16 // 8 = 2
    Cq = C // 8

    k_x, k_wq, k_bq, k_wk, k_bk, k_wv, k_bv = jax.random.split(key, 7)
    x = jax.random.normal(k_x, (B, C, H, W), dtype=jnp.float32)

    # Deterministic parameter init; stored as (C_out, C_in) matrices / (C_out,) biases
    # (the nn.Conv2d 1x1 weight (Cout, Cin, 1, 1) squeezed).
    wq = jax.random.normal(k_wq, (Cq, C), dtype=jnp.float32) * 0.1
    bq = jax.random.normal(k_bq, (Cq,), dtype=jnp.float32) * 0.1
    wk = jax.random.normal(k_wk, (Cq, C), dtype=jnp.float32) * 0.1
    bk = jax.random.normal(k_bk, (Cq,), dtype=jnp.float32) * 0.1
    wv = jax.random.normal(k_wv, (C, C), dtype=jnp.float32) * 0.1
    bv = jax.random.normal(k_bv, (C,), dtype=jnp.float32) * 0.1
    gamma = jnp.zeros((1,), dtype=jnp.float32)     # nn.Parameter(torch.zeros(1))

    out = simplified_self_attention(x, wq, bq, wk, bk, wv, bv, gamma)
    out = jax.block_until_ready(out)
    assert out.shape == (B, C, H, W)

    # Correctness check, robust to the floor-quantizer: elements whose pre-quantized
    # value sits (in the reference) within 1e-3 of a 1/256 bin boundary may legally
    # land one bin apart due to f32 accumulation-order differences; everywhere else
    # the quantized outputs must match exactly (to ~1e-5).
    pre = _reference_prequant(x, wq, bq, wk, bk, wv, bv, gamma)
    ref = jnp.floor(pre * 256.0) / 256.0
    diff = jnp.abs(out - ref)
    frac = pre * 256.0 - jnp.floor(pre * 256.0)
    near_boundary = jnp.minimum(frac, 1.0 - frac) < 1e-3
    ok = jnp.where(near_boundary, diff <= 1.0 / 256.0 + 1e-5, diff <= 1e-5)
    assert bool(jnp.all(ok)), "Pallas kernel mismatch vs JAX reference"
    assert float(jnp.mean(diff > 1e-5)) < 0.01, "too many quantization-bin mismatches"

    print("KERNEL_OK")
</pallas_src>

<mosaic_0001>
module attributes {stable_mosaic.version = 11 : i64} {
  func.func @_attn_kernel(%arg0: i32, %arg1: i32, %arg2: memref<1x16x256xf32, #tpu.memory_space<vmem>>, %arg3: memref<32x16xf32, #tpu.memory_space<vmem>>, %arg4: memref<32x1xf32, #tpu.memory_space<vmem>>, %arg5: memref<1x1xf32, #tpu.memory_space<smem>>, %arg6: memref<1x16x128xf32, #tpu.memory_space<vmem>>, %arg7: memref<32x256xf32, #tpu.memory_space<vmem>>) attributes {dimension_semantics = [#tpu.dimension_semantics<parallel>, #tpu.dimension_semantics<arbitrary>], iteration_bounds = array<i64: 2, 2>, scalar_prefetch = 0 : i64, scratch_operands = 1 : i64, tpu.core_type = #tpu.core_type<tc>, window_params = [{transform_indices = @transform_0, window_bounds = array<i64: 1, 16, 256>}, {pipeline_mode = #tpu.pipeline_mode<synchronous>, transform_indices = @transform_1, window_bounds = array<i64: 32, 16>}, {pipeline_mode = #tpu.pipeline_mode<synchronous>, transform_indices = @transform_2, window_bounds = array<i64: 32, 1>}, {transform_indices = @transform_3, window_bounds = array<i64: 1, 1>}, {transform_indices = @transform_4, window_bounds = array<i64: 1, 16, 128>}]} {
    %c0_i32 = arith.constant 0 : i32
    %0 = arith.cmpi eq, %arg1, %c0_i32 : i32
    %1 = arith.extui %0 : i1 to i32
    %c0_i32_0 = arith.constant 0 : i32
    %2 = arith.cmpi ne, %1, %c0_i32_0 : i32
    scf.if %2 {
      %c0_14 = arith.constant 0 : index
      %c0_15 = arith.constant 0 : index
      %c0_16 = arith.constant 0 : index
      %33 = vector.load %arg2[%c0_14, %c0_15, %c0_16] : memref<1x16x256xf32, #tpu.memory_space<vmem>>, vector<1x16x256xf32>
      %34 = vector.shape_cast %33 : vector<1x16x256xf32> to vector<16x256xf32>
      %c0_17 = arith.constant 0 : index
      %c0_18 = arith.constant 0 : index
      %35 = vector.load %arg3[%c0_17, %c0_18] : memref<32x16xf32, #tpu.memory_space<vmem>>, vector<32x16xf32>
      %cst_19 = arith.constant dense<0.000000e+00> : vector<32x256xf32>
      %36 = tpu.matmul %35, %34, %cst_19 {dimension_numbers = #tpu.dot_dimension_numbers<[1], [0], [0], [1], [0, 0, 1, 1], [], []>} : vector<32x16xf32>, vector<16x256xf32>, vector<32x256xf32> -> vector<32x256xf32>
      %c0_20 = arith.constant 0 : index
      %c0_21 = arith.constant 0 : index
      %37 = vector.load %arg4[%c0_20, %c0_21] : memref<32x1xf32, #tpu.memory_space<vmem>>, vector<32x1xf32>
      %38 = vector.broadcast %37 : vector<32x1xf32> to vector<32x256xf32>
      %39 = arith.addf %36, %38 : vector<32x256xf32>
      %c0_22 = arith.constant 0 : index
      %c0_23 = arith.constant 0 : index
      %40 = vector.load %arg7[%c0_22, %c0_23] : memref<32x256xf32, #tpu.memory_space<vmem>>, vector<32x256xf32>
      tpu.vector_store %arg7[%c0_22, %c0_23], %39 {strides = array<i32>} : memref<32x256xf32, #tpu.memory_space<vmem>>, vector<32x256xf32>,
    } else {
    }
    %c128_i32 = arith.constant 128 : i32
    %3 = arith.muli %arg1, %c128_i32 : i32
    %4 = tpu.assume_multiple %3, 128 : i32
    %c0 = arith.constant 0 : index
    %5 = arith.index_cast %4 : i32 to index
    %6 = vector.load %arg7[%c0, %5] : memref<32x256xf32, #tpu.memory_space<vmem>>, vector<8x128xf32>
    %c8 = arith.constant 8 : index
    %c0_1 = arith.constant 0 : index
    %7 = vector.load %arg7[%c8, %c0_1] : memref<32x256xf32, #tpu.memory_space<vmem>>, vector<8x256xf32>
    %c16 = arith.constant 16 : index
    %c0_2 = arith.constant 0 : index
    %8 = vector.load %arg7[%c16, %c0_2] : memref<32x256xf32, #tpu.memory_space<vmem>>, vector<16x256xf32>
    %cst = arith.constant dense<0.000000e+00> : vector<128x256xf32>
    %9 = tpu.matmul %6, %7, %cst {dimension_numbers = #tpu.dot_dimension_numbers<[0], [0], [1], [1], [0, 1, 1, 1], [], []>} : vector<8x128xf32>, vector<8x256xf32>, vector<128x256xf32> -> vector<128x256xf32>
    %cst_3 = arith.constant dense<0xFF800000> : vector<128xf32>
    %10 = vector.multi_reduction <maximumf>, %9, %cst_3 [1] : vector<128x256xf32> to vector<128xf32>
    %11 = vector.shape_cast %10 : vector<128xf32> to vector<128x1xf32>
    %12 = vector.broadcast %11 : vector<128x1xf32> to vector<128x256xf32>
    %13 = arith.subf %9, %12 : vector<128x256xf32>
    %14 = math.exp %13 : vector<128x256xf32>
    %cst_4 = arith.constant dense<0.000000e+00> : vector<128xf32>
    %15 = vector.multi_reduction <add>, %14, %cst_4 [1] : vector<128x256xf32> to vector<128xf32>
    %16 = vector.shape_cast %15 : vector<128xf32> to vector<128x1xf32>
    %17 = tpu.reciprocal %16 : vector<128x1xf32> -> vector<128x1xf32>
    %18 = vector.broadcast %17 : vector<128x1xf32> to vector<128x256xf32>
    %19 = arith.mulf %14, %18 : vector<128x256xf32>
    %cst_5 = arith.constant dense<0.000000e+00> : vector<16x128xf32>
    %20 = tpu.matmul %8, %19, %cst_5 {dimension_numbers = #tpu.dot_dimension_numbers<[1], [1], [0], [0], [0, 0, 1, 0], [], []>} : vector<16x256xf32>, vector<128x256xf32>, vector<16x128xf32> -> vector<16x128xf32>
    %c0_6 = arith.constant 0 : index
    %c0_7 = arith.constant 0 : index
    %21 = memref.load %arg5[%c0_6, %c0_7] : memref<1x1xf32, #tpu.memory_space<smem>>
    %cst_8 = arith.constant 1.000000e+00 : f32
    %22 = arith.addf %21, %cst_8 : f32
    %23 = vector.broadcast %22 : f32 to vector<16x128xf32>
    %24 = arith.mulf %20, %23 : vector<16x128xf32>
    %cst_9 = arith.constant 2.560000e+02 : f32
    %25 = vector.broadcast %cst_9 : f32 to vector<16x128xf32>
    %26 = arith.mulf %24, %25 : vector<16x128xf32>
    %27 = math.floor %26 : vector<16x128xf32>
    %cst_10 = arith.constant 3.906250e-03 : f32
    %28 = vector.broadcast %cst_10 : f32 to vector<16x128xf32>
    %29 = arith.mulf %27, %28 : vector<16x128xf32>
    %c0_11 = arith.constant 0 : index
    %c0_12 = arith.constant 0 : index
    %c0_13 = arith.constant 0 : index
    %30 = vector.load %arg6[%c0_11, %c0_12, %c0_13] : memref<1x16x128xf32, #tpu.memory_space<vmem>>, vector<1x16x128xf32>
    %31 = vector.shape_cast %30 : vector<1x16x128xf32> to vector<16x128xf32>
    %32 = vector.shape_cast %29 : vector<16x128xf32> to vector<1x16x128xf32>
    tpu.vector_store %arg6[%c0_11, %c0_12, %c0_13], %32 {strides = array<i32>} : memref<1x16x128xf32, #tpu.memory_space<vmem>>, vector<1x16x128xf32>,
    return
  }
  func.func @transform_0(%arg0: i32, %arg1: i32) -> (i32, i32, i32) {
    %c0_i32 = arith.constant 0 : i32
    %c0_i32_0 = arith.constant 0 : i32
    %c0_i32_1 = arith.constant 0 : i32
    return %arg0, %c0_i32, %c0_i32_0 : i32, i32, i32
  }
  func.func @transform_1(%arg0: i32, %arg1: i32) -> (i32, i32) {
    %c0_i32 = arith.constant 0 : i32
    %c0_i32_0 = arith.constant 0 : i32
    %c0_i32_1 = arith.constant 0 : i32
    return %c0_i32, %c0_i32_0 : i32, i32
  }
  func.func @transform_2(%arg0: i32, %arg1: i32) -> (i32, i32) {
    %c0_i32 = arith.constant 0 : i32
    %c0_i32_0 = arith.constant 0 : i32
    %c0_i32_1 = arith.constant 0 : i32
    return %c0_i32, %c0_i32_0 : i32, i32
  }
  func.func @transform_3(%arg0: i32, %arg1: i32) -> (i32, i32) {
    %c0_i32 = arith.constant 0 : i32
    %c0_i32_0 = arith.constant 0 : i32
    %c0_i32_1 = arith.constant 0 : i32
    return %c0_i32, %c0_i32_0 : i32, i32
  }
  func.func @transform_4(%arg0: i32, %arg1: i32) -> (i32, i32, i32) {
    %c0_i32 = arith.constant 0 : i32
    %c0_i32_0 = arith.constant 0 : i32
    return %arg0, %c0_i32, %arg1 : i32, i32, i32
  }
}

</mosaic_0001>

<llo_original>
// kernel: tpu_custom_call.1
$region0: #{tpu_custom_call.1}
  #allocation0 [shape = 'u32[]', space=smem, size = 0x4, offset = 0x4, fixed_abs, tag = 'smem constant byte address 0x4 - core index']
  #allocation1 [shape = 'u32[144,128]{1,0:T(1,128)}', space=vmem, size = 0x12000, scoped, tag = 'internal scratch']
  #allocation2 [shape = 'f32[32,256]{1,0:T(8,128)}', space=vmem, size = 0x8000, scoped, tag = 'scratch operand']
  #allocation3 [shape = 'f32[1,1]{1,0:T(1,128)S(6)}', space=smem, size = 0x200, scoped, tag = 'scoped memory for tpu_custom_call.1']
  %s0 = inlined_call_operand.vmem [shape: f32[2,16,256], index: 0, kind: input, shape index: {}]
  %s1 = inlined_call_operand.vmem [shape: f32[32,16], index: 1, kind: input, shape index: {}]
  %s2 = inlined_call_operand.vmem [shape: f32[32,1], index: 2, kind: input, shape index: {}]
  %s3 = inlined_call_operand.<no memory space> [shape: f32[1,1], index: 3, kind: input, shape index: {}]
  %s4 = inlined_call_operand.hbm [shape: f32[2,16,256], index: 4, kind: output, shape index: {}]
  %s5 = sld [smem:[#allocation0]]
  $region53: #{tpu_custom_call.1} parent=0
    _
  %s7 = ssub.s32 1, %s5
  %s8 = scalar_select 0, %s7, %s5
  %9 = sst [smem:[#allocation3]] %s3
  $region1: #{tpu_custom_call.1} parent=0
    #allocation4 [shape = 'u8[16384]{0}', space=vmem, size = 0x4000, scoped, tag = 'output window, operand 0']
    #allocation5 [shape = 's32[2]{0}', space=sflag, size = 0x8, scoped, tag = 'scoped memory for tpu_custom_call.1']
    %10 = vsyncpa [#allocation5], 0
    %s11 = scalar_lea.sflag [#allocation5], 1
    %12 = vsyncpa %s11, 0
    loop: start=0, step=1, limit=6
    $region2: #{tpu_custom_call.1} parent=1 // loop_pre_header
      _
    $region3: #{tpu_custom_call.1} parent=1 // loop_header
      %s14 = sphi 0, %s18
      %p15 = scmp.ge.s32.totalorder %s14, 6
      %s21 = sphi 0, %s33
      %s22 = sphi 0, %s29
      %s23 = sphi 0, %s21
      %s24 = sphi 0, %s22
      %s25 = sphi 0, %s23
      %s26 = sphi 0, %s24
      %s36 = sphi 0, %s38
      %s39 = sphi 0, %s36
      %s40 = sphi 0, %s39
      %s56 = sphi 0, %s40
      %s60 = sphi 0, %s60
      %s62 = sphi 0, %s60
      %s63 = sphi 0, %s62
      %s77 = sphi 0, %s63
      %s81 = sphi 0, %s81
      %s83 = sphi 0, %s81
      %s84 = sphi 0, %s83
      %s98 = sphi 0, %s84
      %s102 = sphi 0, %s102
      %s104 = sphi 0, %s102
      %s105 = sphi 0, %s104
      %s119 = sphi 0, %s105
      %s127 = sphi 0, %s129
      %s130 = sphi 0, %s127
      %s131 = sphi 0, %s130
      %s147 = sphi 0, %s131
    $region4: #{tpu_custom_call.1} parent=1 // loop_header_branch
      %17 = sbr.rel (%p15) target = $region8
    $region5: #{tpu_custom_call.1} parent=1 // loop_body
      %s19 = ssub.s32 %s14, 1
      %s20 = ssub.s32 %s14, 2
      %s27 = sadd.s32 1, %s22
      %p28 = scmp.ge.s32.totalorder %s27, 2
      %s29 = scalar_select %p28, 0, %s27
      %s30 = sadd.s32 1, %s21
      %s31 = scalar_select %p28, %s30, %s21
      %p32 = scmp.ge.s32.totalorder %s31, 2
      %s33 = scalar_select %p32, 0, %s31
      %s34 = ssub.s32 %s21, %s33
      %p35 = scmp.eq.s32.totalorder %s34, 0
      %s37 = sadd.s32 %s36, 1
      %s38 = scalar_select %p35, %s36, %s37
      %p41 = pneg %p35
      %p42 = scmp.eq.s32.totalorder %s14, 3
      %p43 = por %p41, %p42
      %p44 = scmp.ne.s32.totalorder %s36, %s39
      %p45 = scmp.eq.s32.totalorder %s14, 0
      %p46 = por %p44, %p45
      %p47 = scmp.ne.s32.totalorder %s36, %s39
      %p48 = scmp.eq.s32.totalorder %s19, 3
      %p49 = por %p47, %p48
      %p50 = scmp.ne.s32.totalorder %s39, %s40
      %p51 = scmp.eq.s32.totalorder %s19, 0
      %p52 = por %p50, %p51
      %p53 = scmp.ne.s32.totalorder %s39, %s40
      %p54 = scmp.eq.s32.totalorder %s20, 3
      %p55 = por %p53, %p54
      %p57 = scmp.ne.s32.totalorder %s40, %s56
      %p58 = scmp.eq.s32.totalorder %s20, 0
      %p59 = por %p57, %p58
      %s61 = sadd.s32 %s60, 1
      %p64 = scmp.eq.s32.totalorder %s14, 3
      %p65 = scmp.ne.s32.totalorder %s60, %s62
      %p66 = scmp.eq.s32.totalorder %s14, 0
      %p67 = por %p65, %p66
      %p68 = scmp.ne.s32.totalorder %s60, %s62
      %p69 = scmp.eq.s32.totalorder %s19, 3
      %p70 = por %p68, %p69
      %p71 = scmp.ne.s32.totalorder %s62, %s63
      %p72 = scmp.eq.s32.totalorder %s19, 0
      %p73 = por %p71, %p72
      %p74 = scmp.ne.s32.totalorder %s62, %s63
      %p75 = scmp.eq.s32.totalorder %s20, 3
      %p76 = por %p74, %p75
      %p78 = scmp.ne.s32.totalorder %s63, %s77
      %p79 = scmp.eq.s32.totalorder %s20, 0
      %p80 = por %p78, %p79
      %s82 = sadd.s32 %s81, 1
      %p85 = scmp.eq.s32.totalorder %s14, 3
      %p86 = scmp.ne.s32.totalorder %s81, %s83
      %p87 = scmp.eq.s32.totalorder %s14, 0
      %p88 = por %p86, %p87
      %p89 = scmp.ne.s32.totalorder %s81, %s83
      %p90 = scmp.eq.s32.totalorder %s19, 3
      %p91 = por %p89, %p90
      %p92 = scmp.ne.s32.totalorder %s83, %s84
      %p93 = scmp.eq.s32.totalorder %s19, 0
      %p94 = por %p92, %p93
      %p95 = scmp.ne.s32.totalorder %s83, %s84
      %p96 = scmp.eq.s32.totalorder %s20, 3
      %p97 = por %p95, %p96
      %p99 = scmp.ne.s32.totalorder %s84, %s98
      %p100 = scmp.eq.s32.totalorder %s20, 0
      %p101 = por %p99, %p100
      %s103 = sadd.s32 %s102, 1
      %p106 = scmp.eq.s32.totalorder %s14, 3
      %p107 = scmp.ne.s32.totalorder %s102, %s104
      %p108 = scmp.eq.s32.totalorder %s14, 0
      %p109 = por %p107, %p108
      %p110 = scmp.ne.s32.totalorder %s102, %s104
      %p111 = scmp.eq.s32.totalorder %s19, 3
      %p112 = por %p110, %p111
      %p113 = scmp.ne.s32.totalorder %s104, %s105
      %p114 = scmp.eq.s32.totalorder %s19, 0
      %p115 = por %p113, %p114
      %p116 = scmp.ne.s32.totalorder %s104, %s105
      %p117 = scmp.eq.s32.totalorder %s20, 3
      %p118 = por %p116, %p117
      %p120 = scmp.ne.s32.totalorder %s105, %s119
      %p121 = scmp.eq.s32.totalorder %s20, 0
      %p122 = por %p120, %p121
      %s123 = ssub.s32 %s21, %s33
      %s124 = ssub.s32 %s22, %s29
      %s125 = sor.u32 %s123, %s124
      %p126 = scmp.eq.s32.totalorder %s125, 0
      %s128 = sadd.s32 %s127, 1
      %s129 = scalar_select %p126, %s127, %s128
      %p132 = pneg %p126
      %p133 = scmp.eq.s32.totalorder %s14, 3
      %p134 = por %p132, %p133
      %p135 = scmp.ne.s32.totalorder %s127, %s130
      %p136 = scmp.eq.s32.totalorder %s14, 0
      %p137 = por %p135, %p136
      %p138 = scmp.ne.s32.totalorder %s127, %s130
      %p139 = scmp.eq.s32.totalorder %s19, 3
      %p140 = por %p138, %p139
      %p141 = scmp.ne.s32.totalorder %s130, %s131
      %p142 = scmp.eq.s32.totalorder %s19, 0
      %p143 = por %p141, %p142
      %p144 = scmp.ne.s32.totalorder %s130, %s131
      %p145 = scmp.eq.s32.totalorder %s20, 3
      %p146 = por %p144, %p145
      %p148 = scmp.ne.s32.totalorder %s131, %s147
      %p149 = scmp.eq.s32.totalorder %s20, 0
      %p150 = por %p148, %p149
      %p151 = scmp.le.s32.totalorder 1, %s14
      %p152 = scmp.lt.s32.totalorder %s14, 5
      %p153 = pnand %p151, %p152
      %p154 = pneg %p153
      // Predicated region
      $region9: #{tpu_custom_call.1} parent=5 // pred_check
        _
      $region10: #{tpu_custom_call.1} parent=5 // pred_check_branch
        %156 = sbr.rel (%p153) target = $region12
      $region11: #{tpu_custom_call.1} parent=5 // pred_region
        %s157 = ssub.s32 %s14, 1
        // Predicated region
        $region13: #{tpu_custom_call.1} parent=11 // pred_check
          %p158 = pneg %p73
        $region14: #{tpu_custom_call.1} parent=11 // pred_check_branch
          %160 = sbr.rel (%p158) target = $region16
        $region15: #{tpu_custom_call.1} parent=11 // pred_region
          _
        $region16: #{tpu_custom_call.1} parent=11 // pred_fallthru
          _
        // Predicated region
        $region17: #{tpu_custom_call.1} parent=11 // pred_check
          %p161 = pneg %p94
        $region18: #{tpu_custom_call.1} parent=11 // pred_check_branch
          %163 = sbr.rel (%p161) target = $region20
        $region19: #{tpu_custom_call.1} parent=11 // pred_region
          _
        $region20: #{tpu_custom_call.1} parent=11 // pred_fallthru
          _
        // Predicated region
        $region21: #{tpu_custom_call.1} parent=11 // pred_check
          %p164 = pneg %p115
        $region22: #{tpu_custom_call.1} parent=11 // pred_check_branch
          %166 = sbr.rel (%p164) target = $region24
        $region23: #{tpu_custom_call.1} parent=11 // pred_region
          _
        $region24: #{tpu_custom_call.1} parent=11 // pred_fallthru
          _
      $region12: #{tpu_custom_call.1} parent=5 // pred_fallthru
        _
      %p167 = scmp.lt.s32.totalorder %s14, 4
      // Predicated region
      $region25: #{tpu_custom_call.1} parent=5 // pred_check
        %p168 = pneg %p167
      $region26: #{tpu_custom_call.1} parent=5 // pred_check_branch
        %170 = sbr.rel (%p168) target = $region28
      $region27: #{tpu_custom_call.1} parent=5 // pred_region
        // Predicated region
        $region29: #{tpu_custom_call.1} parent=27 // pred_check
          %p171 = pneg %p46
        $region30: #{tpu_custom_call.1} parent=27 // pred_check_branch
          %173 = sbr.rel (%p171) target = $region32
        $region31: #{tpu_custom_call.1} parent=27 // pred_region
          %p174 = scmp.lt.s32.totalorder %s21, 1
          %s175 = scalar_select %p174, %s21, 1
          %s176 = smul.addr %s175, 4
          %s177 = smul.addr %s176, 8
          %s178 = scalar_lea.vmem %s0, %s177
        $region32: #{tpu_custom_call.1} parent=27 // pred_fallthru
          _
      $region28: #{tpu_custom_call.1} parent=5 // pred_fallthru
        _
      %p179 = scmp.le.s32.totalorder 1, %s14
      %p180 = scmp.lt.s32.totalorder %s14, 5
      %p181 = pnand %p179, %p180
      %p182 = pneg %p181
      // Predicated region
      $region33: #{tpu_custom_call.1} parent=5 // pred_check
        _
      $region34: #{tpu_custom_call.1} parent=5 // pred_check_branch
        %184 = sbr.rel (%p181) target = $region36
      $region35: #{tpu_custom_call.1} parent=5 // pred_region
        %s185 = ssub.s32 %s14, 1
        %p186 = scmp.lt.s32.totalorder %s23, 1
        %s187 = scalar_select %p186, %s23, 1
        %s188 = smul.addr %s187, 4
        %s189 = smul.addr %s188, 8
        %s190 = scalar_lea.vmem %s0, %s189
        %p191 = pneg %p52
        %p192 = pneg %p49
        %p193 = pneg %p73
        %p194 = pneg %p70
        %p195 = pneg %p94
        %p196 = pneg %p91
        %p197 = pneg %p115
        %p198 = pneg %p112
        %p199 = pneg %p143
        %p200 = pneg %p140
        %s201 = sand.u32 %s130, 1
        %s202 = scalar_lea.sflag [#allocation5], %s201
        %s203 = sand.u32 %s130, 1
        %s204 = smul.addr %s203, 16
        %s205 = scalar_lea.vmem [#allocation4], %s204
        %p206 = scmp.lt.s32.totalorder %s23, 1
        %s207 = scalar_select %p206, %s23, 1
        %s208 = smul.addr %s207, 4
        %s209 = smul.addr %s208, 8
        %s210 = scalar_lea.vmem %s0, %s209
        %p211 = scmp.eq.s32.totalorder %s24, 0
        // Predicated region
        $region37: #{tpu_custom_call.1} parent=35 // pred_check
          %p212 = pneg %p211
        $region38: #{tpu_custom_call.1} parent=35 // pred_check_branch
          %214 = sbr.rel (%p212) target = $region40
        $region39: #{tpu_custom_call.1} parent=35 // pred_region
          %v215 = vld [vmem:[%s210] sm:$0xff]
          %v216 = vld [vmem:[%s210 + $0x8] sm:$0xff]
          %v217 = vld [vmem:[%s210 + $0x10] sm:$0xff]
          %v218 = vld [vmem:[%s210 + $0x18] sm:$0xff]
          %v219 = vld [vmem:[%s1] sm:$0xff]
          %v220 = vld [vmem:[%s1 + $0x8] sm:$0xff]
          %v221 = vld [vmem:[%s1 + $0x10] sm:$0xff]
          %v222 = vld [vmem:[%s1 + $0x18] sm:$0xff]
          %v223 = vld [vmem:[%s2] sm:$0xff]
          %v224 = vld [vmem:[%s2 + $0x8] sm:$0xff]
          %v225 = vld [vmem:[%s2 + $0x10] sm:$0xff]
          %v226 = vld [vmem:[%s2 + $0x18] sm:$0xff]
          %228 = vset.pattern.permute.xlu0 0
          %229 = vperm.xlu0 %228, %v223
          %v230 = vpop.permute.xlu0 %229
          %233 = vset.pattern.permute.xlu0 0
          %234 = vperm.xlu0 %233, %v224
          %v235 = vpop.permute.xlu0 %234
          %238 = vset.pattern.permute.xlu0 0
          %239 = vperm.xlu0 %238, %v225
          %v240 = vpop.permute.xlu0 %239
          %243 = vset.pattern.permute.xlu0 0
          %244 = vperm.xlu0 %243, %v226
          %v245 = vpop.permute.xlu0 %244
          %vm247 = vcmask 130048
          %v249 = vsel %vm247, %v219, 0
          %v252 = vsel %vm247, %v220, 0
          %v255 = vsel %vm247, %v221, 0
          %v258 = vsel %vm247, %v222, 0
          %260 = vmatprep.subr.mxu0 %v216
          %261 = vmatpush1.msra.mxu0 %v215
          %262 = vmatprep.subr.mxu0 %v218
          %263 = vmatpush1.msra.mxu0 %v217
          %264 = vmatprep.subr.mxu0 0.0
          %265 = vmatpush1.msra.mxu0 0.0
          %266 = vmatprep.subr.mxu0 0.0
          %267 = vmatpush1.msra.mxu0 0.0
          %268 = vmatprep.subr.mxu0 0.0
          %269 = vmatpush1.msra.mxu0 0.0
          %270 = vmatprep.subr.mxu0 0.0
          %271 = vmatpush1.msra.mxu0 0.0
          %272 = vmatprep.subr.mxu0 0.0
          %273 = vmatpush1.msra.mxu0 0.0
          %274 = vmatprep.subr.mxu0 0.0
          %275 = vmatpush1.msra.mxu0 0.0
          %276 = vmatprep.subr.mxu0 0.0
          %277 = vmatpush1.msra.mxu0 0.0
          %278 = vmatprep.subr.mxu0 0.0
          %279 = vmatpush1.msra.mxu0 0.0
          %280 = vmatprep.subr.mxu0 0.0
          %281 = vmatpush1.msra.mxu0 0.0
          %282 = vmatprep.subr.mxu0 0.0
          %283 = vmatpush1.msra.mxu0 0.0
          %284 = vmatprep.subr.mxu0 0.0
          %285 = vmatpush1.msra.mxu0 0.0
          %286 = vmatprep.subr.mxu0 0.0
          %287 = vmatpush1.msra.mxu0 0.0
          %288 = vmatprep.subr.mxu0 0.0
          %289 = vmatpush1.msra.mxu0 0.0
          %290 = vmatprep.subr.mxu0 0.0
          %291 = vmatpush1.msra.mxu0 0.0
          %292 = vmatprep.subr.mxu0 0.0
          %293 = vmatpush1.msra.mxu0 0.0
          %294 = vmatprep.subr.mxu0 0.0
          %295 = vmatpush1.msra.mxu0 0.0
          %296 = vmatprep.subr.mxu0 0.0
          %297 = vmatpush1.msra.mxu0 0.0
          %298 = vmatprep.subr.mxu0 0.0
          %299 = vmatpush1.msra.mxu0 0.0
          %300 = vmatprep.subr.mxu0 0.0
          %301 = vmatpush1.msra.mxu0 0.0
          %302 = vmatprep.subr.mxu0 0.0
          %303 = vmatpush1.msra.mxu0 0.0
          %304 = vmatprep.subr.mxu0 0.0
          %305 = vmatpush1.msra.mxu0 0.0
          %306 = vmatprep.subr.mxu0 0.0
          %307 = vmatpush1.msra.mxu0 0.0
          %308 = vmatprep.subr.mxu0 0.0
          %309 = vmatpush1.msra.mxu0 0.0
          %310 = vmatprep.subr.mxu0 0.0
          %311 = vmatpush1.msra.mxu0 0.0
          %312 = vmatprep.subr.mxu0 0.0
          %313 = vmatpush1.msra.mxu0 0.0
          %314 = vmatprep.subr.mxu0 0.0
          %315 = vmatpush1.msra.mxu0 0.0
          %316 = vmatprep.subr.mxu0 0.0
          %317 = vmatpush1.msra.mxu0 0.0
          %318 = vmatprep.subr.mxu0 0.0
          %319 = vmatpush1.msra.mxu0 0.0
          %320 = vmatprep.subr.mxu0 0.0
          %321 = vmatpush1.msra.mxu0 0.0
          %322 = vmatprep.subr.mxu0 0.0
          %323 = vmatpush1.msra.mxu0 0.0
          %324 = vmatprep.mubr.f32.mxu0 0.0
          %325 = vmatmul.mubr.f32.gmra.mrb[0].mxu0 %v249
          %v326 = vpop.f32.mrb[0].mxu0
          %v327 = vadd.f32 %v230, %v326
          %v328 = vpop.f32.mrb[0].mxu0
          %v329 = vadd.f32 %v230, %v328
          %330 = vmatprep.mubr.f32.mxu0 0.0
          %331 = vmatmul.mubr.f32.gmra.mrb[0].mxu0 %v252
          %v332 = vpop.f32.mrb[0].mxu0
          %v333 = vadd.f32 %v235, %v332
          %v334 = vpop.f32.mrb[0].mxu0
          %v335 = vadd.f32 %v235, %v334
          %336 = vmatprep.mubr.f32.mxu0 0.0
          %337 = vmatmul.mubr.f32.gmra.mrb[0].mxu0 %v255
          %v338 = vpop.f32.mrb[0].mxu0
          %v339 = vadd.f32 %v240, %v338
          %v340 = vpop.f32.mrb[0].mxu0
          %v341 = vadd.f32 %v240, %v340
          %342 = vmatprep.mubr.f32.mxu0 0.0
          %343 = vmatmul.mubr.f32.gmra.mrb[0].mxu0 %v258
          %v344 = vpop.f32.mrb[0].mxu0
          %v345 = vadd.f32 %v245, %v344
          %v346 = vpop.f32.mrb[0].mxu0
          %v347 = vadd.f32 %v245, %v346
          %348 = vdwg.mxu0
          %349 = vst [vmem:[#allocation2] sm:$0xff] %v327
          %350 = vst [vmem:[#allocation2 + $0x8] sm:$0xff] %v329
          %351 = vst [vmem:[#allocation2 + $0x10] sm:$0xff] %v333
          %352 = vst [vmem:[#allocation2 + $0x18] sm:$0xff] %v335
          %353 = vst [vmem:[#allocation2 + $0x20] sm:$0xff] %v339
          %354 = vst [vmem:[#allocation2 + $0x28] sm:$0xff] %v341
          %355 = vst [vmem:[#allocation2 + $0x30] sm:$0xff] %v345
          %356 = vst [vmem:[#allocation2 + $0x38] sm:$0xff] %v347
        $region40: #{tpu_custom_call.1} parent=35 // pred_fallthru
          _
        %s357 = smul.u32 %s24, 128
        %s358 = sshra.s32 %s357, 7
        %s359 = sand.u32 %s357, 127
        %s360 = smul.addr %s358, 8
        %s361 = scalar_lea.vmem [#allocation2], %s360
        %v362 = vld [vmem:[%s361] sm:$0xff]
        %v363 = vld [vmem:[#allocation2 + $0x10] sm:$0xff]
        %v364 = vld [vmem:[#allocation2 + $0x18] sm:$0xff]
        %v365 = vld [vmem:[#allocation2 + $0x20] sm:$0xff]
        %v366 = vld [vmem:[#allocation2 + $0x28] sm:$0xff]
        %v367 = vld [vmem:[#allocation2 + $0x30] sm:$0xff]
        %v368 = vld [vmem:[#allocation2 + $0x38] sm:$0xff]
        %369 = vxpose.xlu0.b32.start [1/16] %v362, 128
        %370 = vxpose.xlu0.b32.cont [2/16] 0.0, 128
        %371 = vxpose.xlu0.b32.cont [3/16] 0.0, 128
        %372 = vxpose.xlu0.b32.cont [4/16] 0.0, 128
        %373 = vxpose.xlu0.b32.cont [5/16] 0.0, 128
        %374 = vxpose.xlu0.b32.cont [6/16] 0.0, 128
        %375 = vxpose.xlu0.b32.cont [7/16] 0.0, 128
        %376 = vxpose.xlu0.b32.cont [8/16] 0.0, 128
        %377 = vxpose.xlu0.b32.cont [9/16] 0.0, 128
        %378 = vxpose.xlu0.b32.cont [10/16] 0.0, 128
        %379 = vxpose.xlu0.b32.cont [11/16] 0.0, 128
        %380 = vxpose.xlu0.b32.cont [12/16] 0.0, 128
        %381 = vxpose.xlu0.b32.cont [13/16] 0.0, 128
        %382 = vxpose.xlu0.b32.cont [14/16] 0.0, 128
        %383 = vxpose.xlu0.b32.cont [15/16] 0.0, 128
        %384 = vxpose.xlu0.b32.end [16/16] 0.0, 128
        %v385 = vpop.trf.xlu0
        %v386 = vpop.trf.xlu0
        %v387 = vpop.trf.xlu0
        %v388 = vpop.trf.xlu0
        %v389 = vpop.trf.xlu0
        %v390 = vpop.trf.xlu0
        %v391 = vpop.trf.xlu0
        %v392 = vpop.trf.xlu0
        %v393 = vpop.trf.xlu0
        %v394 = vpop.trf.xlu0
        %v395 = vpop.trf.xlu0
        %v396 = vpop.trf.xlu0
        %v397 = vpop.trf.xlu0
        %v398 = vpop.trf.xlu0
        %v399 = vpop.trf.xlu0
        %v400 = vpop.trf.xlu0
        %vm401 = vcmask 64512
        %v403 = vsel %vm401, %v385, 0
        %v406 = vsel %vm401, %v386, 0
        %v409 = vsel %vm401, %v387, 0
        %v412 = vsel %vm401, %v388, 0
        %v415 = vsel %vm401, %v389, 0
        %v418 = vsel %vm401, %v390, 0
        %v421 = vsel %vm401, %v391, 0
        %v424 = vsel %vm401, %v392, 0
        %v427 = vsel %vm401, %v393, 0
        %v430 = vsel %vm401, %v394, 0
        %v433 = vsel %vm401, %v395, 0
        %v436 = vsel %vm401, %v396, 0
        %v439 = vsel %vm401, %v397, 0
        %v442 = vsel %vm401, %v398, 0
        %v445 = vsel %vm401, %v399, 0
        %v448 = vsel %vm401, %v400, 0
        %450 = vmatprep.subr.mxu0 %v364
        %451 = vmatpush1.msra.mxu0 %v363
        %452 = vmatprep.subr.mxu0 0.0
        %453 = vmatpush1.msra.mxu0 0.0
        %454 = vmatprep.subr.mxu0 0.0
        %455 = vmatpush1.msra.mxu0 0.0
        %456 = vmatprep.subr.mxu0 0.0
        %457 = vmatpush1.msra.mxu0 0.0
        %458 = vmatprep.subr.mxu0 0.0
        %459 = vmatpush1.msra.mxu0 0.0
        %460 = vmatprep.subr.mxu0 0.0
        %461 = vmatpush1.msra.mxu0 0.0
        %462 = vmatprep.subr.mxu0 0.0
        %463 = vmatpush1.msra.mxu0 0.0
        %464 = vmatprep.subr.mxu0 0.0
        %465 = vmatpush1.msra.mxu0 0.0
        %466 = vmatprep.subr.mxu0 0.0
        %467 = vmatpush1.msra.mxu0 0.0
        %468 = vmatprep.subr.mxu0 0.0
        %469 = vmatpush1.msra.mxu0 0.0
        %470 = vmatprep.subr.mxu0 0.0
        %471 = vmatpush1.msra.mxu0 0.0
        %472 = vmatprep.subr.mxu0 0.0
        %473 = vmatpush1.msra.mxu0 0.0
        %474 = vmatprep.subr.mxu0 0.0
        %475 = vmatpush1.msra.mxu0 0.0
        %476 = vmatprep.subr.mxu0 0.0
        %477 = vmatpush1.msra.mxu0 0.0
        %478 = vmatprep.subr.mxu0 0.0
        %479 = vmatpush1.msra.mxu0 0.0
        %480 = vmatprep.subr.mxu0 0.0
        %481 = vmatpush1.msra.mxu0 0.0
        %482 = vmatprep.subr.mxu0 0.0
        %483 = vmatpush1.msra.mxu0 0.0
        %484 = vmatprep.subr.mxu0 0.0
        %485 = vmatpush1.msra.mxu0 0.0
        %486 = vmatprep.subr.mxu0 0.0
        %487 = vmatpush1.msra.mxu0 0.0
        %488 = vmatprep.subr.mxu0 0.0
        %489 = vmatpush1.msra.mxu0 0.0
        %490 = vmatprep.subr.mxu0 0.0
        %491 = vmatpush1.msra.mxu0 0.0
        %492 = vmatprep.subr.mxu0 0.0
        %493 = vmatpush1.msra.mxu0 0.0
        %494 = vmatprep.subr.mxu0 0.0
        %495 = vmatpush1.msra.mxu0 0.0
        %496 = vmatprep.subr.mxu0 0.0
        %497 = vmatpush1.msra.mxu0 0.0
        %498 = vmatprep.subr.mxu0 0.0
        %499 = vmatpush1.msra.mxu0 0.0
        %500 = vmatprep.subr.mxu0 0.0
        %501 = vmatpush1.msra.mxu0 0.0
        %502 = vmatprep.subr.mxu0 0.0
        %503 = vmatpush1.msra.mxu0 0.0
        %504 = vmatprep.subr.mxu0 0.0
        %505 = vmatpush1.msra.mxu0 0.0
        %506 = vmatprep.subr.mxu0 0.0
        %507 = vmatpush1.msra.mxu0 0.0
        %508 = vmatprep.subr.mxu0 0.0
        %509 = vmatpush1.msra.mxu0 0.0
        %510 = vmatprep.subr.mxu0 0.0
        %511 = vmatpush1.msra.mxu0 0.0
        %512 = vmatprep.subr.mxu0 0.0
        %513 = vmatpush1.msra.mxu0 0.0
        %514 = vmatprep.mubr.f32.mxu0 0.0
        %515 = vmatmul.mubr.f32.gmra.mrb[0].mxu0 %v403
        %v516 = vpop.f32.mrb[0].mxu0
        %v517 = vadd.f32 0.0, %v516
        %v518 = vpop.f32.mrb[0].mxu0
        %v519 = vadd.f32 0.0, %v518
        %520 = vmatprep.mubr.f32.mxu0 0.0
        %521 = vmatmul.mubr.f32.gmra.mrb[0].mxu0 %v406
        %v522 = vpop.f32.mrb[0].mxu0
        %v523 = vadd.f32 0.0, %v522
        %v524 = vpop.f32.mrb[0].mxu0
        %v525 = vadd.f32 0.0, %v524
        %526 = vmatprep.mubr.f32.mxu0 0.0
        %527 = vmatmul.mubr.f32.gmra.mrb[0].mxu0 %v409
        %v528 = vpop.f32.mrb[0].mxu0
        %v529 = vadd.f32 0.0, %v528
        %v530 = vpop.f32.mrb[0].mxu0
        %v531 = vadd.f32 0.0, %v530
        %532 = vmatprep.mubr.f32.mxu0 0.0
        %533 = vmatmul.mubr.f32.gmra.mrb[0].mxu0 %v412
        %v534 = vpop.f32.mrb[0].mxu0
        %v535 = vadd.f32 0.0, %v534
        %v536 = vpop.f32.mrb[0].mxu0
        %v537 = vadd.f32 0.0, %v536
        %538 = vmatprep.mubr.f32.mxu0 0.0
        %539 = vmatmul.mubr.f32.gmra.mrb[0].mxu0 %v415
        %v540 = vpop.f32.mrb[0].mxu0
        %v541 = vadd.f32 0.0, %v540
        %v542 = vpop.f32.mrb[0].mxu0
        %v543 = vadd.f32 0.0, %v542
        %544 = vmatprep.mubr.f32.mxu0 0.0
        %545 = vmatmul.mubr.f32.gmra.mrb[0].mxu0 %v418
        %v546 = vpop.f32.mrb[0].mxu0
        %v547 = vadd.f32 0.0, %v546
        %v548 = vpop.f32.mrb[0].mxu0
        %v549 = vadd.f32 0.0, %v548
        %550 = vmatprep.mubr.f32.mxu0 0.0
        %551 = vmatmul.mubr.f32.gmra.mrb[0].mxu0 %v421
        %v552 = vpop.f32.mrb[0].mxu0
        %v553 = vadd.f32 0.0, %v552
        %v554 = vpop.f32.mrb[0].mxu0
        %v555 = vadd.f32 0.0, %v554
        %556 = vmatprep.mubr.f32.mxu0 0.0
        %557 = vmatmul.mubr.f32.gmra.mrb[0].mxu0 %v424
        %v558 = vpop.f32.mrb[0].mxu0
        %v559 = vadd.f32 0.0, %v558
        %v560 = vpop.f32.mrb[0].mxu0
        %v561 = vadd.f32 0.0, %v560
        %562 = vmatprep.mubr.f32.mxu0 0.0
        %563 = vmatmul.mubr.f32.gmra.mrb[0].mxu0 %v427
        %v564 = vpop.f32.mrb[0].mxu0
        %v565 = vadd.f32 0.0, %v564
        %v566 = vpop.f32.mrb[0].mxu0
        %v567 = vadd.f32 0.0, %v566
        %568 = vmatprep.mubr.f32.mxu0 0.0
        %569 = vmatmul.mubr.f32.gmra.mrb[0].mxu0 %v430
        %v570 = vpop.f32.mrb[0].mxu0
        %v571 = vadd.f32 0.0, %v570
        %v572 = vpop.f32.mrb[0].mxu0
        %v573 = vadd.f32 0.0, %v572
        %574 = vmatprep.mubr.f32.mxu0 0.0
        %575 = vmatmul.mubr.f32.gmra.mrb[0].mxu0 %v433
        %v576 = vpop.f32.mrb[0].mxu0
        %v577 = vadd.f32 0.0, %v576
        %v578 = vpop.f32.mrb[0].mxu0
        %v579 = vadd.f32 0.0, %v578
        %580 = vmatprep.mubr.f32.mxu0 0.0
        %581 = vmatmul.mubr.f32.gmra.mrb[0].mxu0 %v436
        %v582 = vpop.f32.mrb[0].mxu0
        %v583 = vadd.f32 0.0, %v582
        %v584 = vpop.f32.mrb[0].mxu0
        %v585 = vadd.f32 0.0, %v584
        %586 = vmatprep.mubr.f32.mxu0 0.0
        %587 = vmatmul.mubr.f32.gmra.mrb[0].mxu0 %v439
        %v588 = vpop.f32.mrb[0].mxu0
        %v589 = vadd.f32 0.0, %v588
        %v590 = vpop.f32.mrb[0].mxu0
        %v591 = vadd.f32 0.0, %v590
        %592 = vmatprep.mubr.f32.mxu0 0.0
        %593 = vmatmul.mubr.f32.gmra.mrb[0].mxu0 %v442
        %v594 = vpop.f32.mrb[0].mxu0
        %v595 = vadd.f32 0.0, %v594
        %v596 = vpop.f32.mrb[0].mxu0
        %v597 = vadd.f32 0.0, %v596
        %598 = vmatprep.mubr.f32.mxu0 0.0
        %599 = vmatmul.mubr.f32.gmra.mrb[0].mxu0 %v445
        %v600 = vpop.f32.mrb[0].mxu0
        %v601 = vadd.f32 0.0, %v600
        %v602 = vpop.f32.mrb[0].mxu0
        %v603 = vadd.f32 0.0, %v602
        %604 = vmatprep.mubr.f32.mxu0 0.0
        %605 = vmatmul.mubr.f32.gmra.mrb[0].mxu0 %v448
        %v606 = vpop.f32.mrb[0].mxu0
        %v607 = vadd.f32 0.0, %v606
        %v608 = vpop.f32.mrb[0].mxu0
        %v609 = vadd.f32 0.0, %v608
        %610 = vdwg.mxu0
        %v611 = vmax.f32 %v517, %v519
        %612 = vmax.xlane.f32.xlu0 %v611
        %v613 = vpop.xlane.xlu0 %612
        %v614 = vmax.f32 %v523, %v525
        %615 = vmax.xlane.f32.xlu0 %v614
        %v616 = vpop.xlane.xlu0 %615
        %v617 = vmax.f32 %v529, %v531
        %618 = vmax.xlane.f32.xlu0 %v617
        %v619 = vpop.xlane.xlu0 %618
        %v620 = vmax.f32 %v535, %v537
        %621 = vmax.xlane.f32.xlu0 %v620
        %v622 = vpop.xlane.xlu0 %621
        %v623 = vmax.f32 %v541, %v543
        %624 = vmax.xlane.f32.xlu0 %v623
        %v625 = vpop.xlane.xlu0 %624
        %v626 = vmax.f32 %v547, %v549
        %627 = vmax.xlane.f32.xlu0 %v626
        %v628 = vpop.xlane.xlu0 %627
        %v629 = vmax.f32 %v553, %v555
        %630 = vmax.xlane.f32.xlu0 %v629
        %v631 = vpop.xlane.xlu0 %630
        %v632 = vmax.f32 %v559, %v561
        %633 = vmax.xlane.f32.xlu0 %v632
        %v634 = vpop.xlane.xlu0 %633
        %v635 = vmax.f32 %v565, %v567
        %636 = vmax.xlane.f32.xlu0 %v635
        %v637 = vpop.xlane.xlu0 %636
        %v638 = vmax.f32 %v571, %v573
        %639 = vmax.xlane.f32.xlu0 %v638
        %v640 = vpop.xlane.xlu0 %639
        %v641 = vmax.f32 %v577, %v579
        %642 = vmax.xlane.f32.xlu0 %v641
        %v643 = vpop.xlane.xlu0 %642
        %v644 = vmax.f32 %v583, %v585
        %645 = vmax.xlane.f32.xlu0 %v644
        %v646 = vpop.xlane.xlu0 %645
        %v647 = vmax.f32 %v589, %v591
        %648 = vmax.xlane.f32.xlu0 %v647
        %v649 = vpop.xlane.xlu0 %648
        %v650 = vmax.f32 %v595, %v597
        %651 = vmax.xlane.f32.xlu0 %v650
        %v652 = vpop.xlane.xlu0 %651
        %v653 = vmax.f32 %v601, %v603
        %654 = vmax.xlane.f32.xlu0 %v653
        %v655 = vpop.xlane.xlu0 %654
        %v656 = vmax.f32 %v607, %v609
        %657 = vmax.xlane.f32.xlu0 %v656
        %v658 = vpop.xlane.xlu0 %657
        %v659 = vsub.f32 %v517, %v613
        %v660 = vsub.f32 %v519, %v613
        %v661 = vsub.f32 %v523, %v616
        %v662 = vsub.f32 %v525, %v616
        %v663 = vsub.f32 %v529, %v619
        %v664 = vsub.f32 %v531, %v619
        %v665 = vsub.f32 %v535, %v622
        %v666 = vsub.f32 %v537, %v622
        %v667 = vsub.f32 %v541, %v625
        %v668 = vsub.f32 %v543, %v625
        %v669 = vsub.f32 %v547, %v628
        %v670 = vsub.f32 %v549, %v628
        %v671 = vsub.f32 %v553, %v631
        %v672 = vsub.f32 %v555, %v631
        %v673 = vsub.f32 %v559, %v634
        %v674 = vsub.f32 %v561, %v634
        %v675 = vsub.f32 %v565, %v637
        %v676 = vsub.f32 %v567, %v637
        %v677 = vsub.f32 %v571, %v640
        %v678 = vsub.f32 %v573, %v640
        %v679 = vsub.f32 %v577, %v643
        %v680 = vsub.f32 %v579, %v643
        %v681 = vsub.f32 %v583, %v646
        %v682 = vsub.f32 %v585, %v646
        %v683 = vsub.f32 %v589, %v649
        %v684 = vsub.f32 %v591, %v649
        %v685 = vsub.f32 %v595, %v652
        %v686 = vsub.f32 %v597, %v652
        %v687 = vsub.f32 %v601, %v655
        %v688 = vsub.f32 %v603, %v655
        %v689 = vsub.f32 %v607, %v658
        %v690 = vsub.f32 %v609, %v658
        %v691 = vmul.f32 %v659, 1.442695
        %v692 = vpow.pop %v691
        %v693 = vmul.f32 %v660, 1.442695
        %v694 = vpow.pop %v693
        %v695 = vmul.f32 %v661, 1.442695
        %v696 = vpow.pop %v695
        %v697 = vmul.f32 %v662, 1.442695
        %v698 = vpow.pop %v697
        %v699 = vmul.f32 %v663, 1.442695
        %v700 = vpow.pop %v699
        %v701 = vmul.f32 %v664, 1.442695
        %v702 = vpow.pop %v701
        %v703 = vmul.f32 %v665, 1.442695
        %v704 = vpow.pop %v703
        %v705 = vmul.f32 %v666, 1.442695
        %v706 = vpow.pop %v705
        %v707 = vmul.f32 %v667, 1.442695
        %v708 = vpow.pop %v707
        %v709 = vmul.f32 %v668, 1.442695
        %v710 = vpow.pop %v709
        %v711 = vmul.f32 %v669, 1.442695
        %v712 = vpow.pop %v711
        %v713 = vmul.f32 %v670, 1.442695
        %v714 = vpow.pop %v713
        %v715 = vmul.f32 %v671, 1.442695
        %v716 = vpow.pop %v715
        %v717 = vmul.f32 %v672, 1.442695
        %v718 = vpow.pop %v717
        %v719 = vmul.f32 %v673, 1.442695
        %v720 = vpow.pop %v719
        %v721 = vmul.f32 %v674, 1.442695
        %v722 = vpow.pop %v721
        %v723 = vmul.f32 %v675, 1.442695
        %v724 = vpow.pop %v723
        %v725 = vmul.f32 %v676, 1.442695
        %v726 = vpow.pop %v725
        %v727 = vmul.f32 %v677, 1.442695
        %v728 = vpow.pop %v727
        %v729 = vmul.f32 %v678, 1.442695
        %v730 = vpow.pop %v729
        %v731 = vmul.f32 %v679, 1.442695
        %v732 = vpow.pop %v731
        %v733 = vmul.f32 %v680, 1.442695
        %v734 = vpow.pop %v733
        %v735 = vmul.f32 %v681, 1.442695
        %v736 = vpow.pop %v735
        %v737 = vmul.f32 %v682, 1.442695
        %v738 = vpow.pop %v737
        %v739 = vmul.f32 %v683, 1.442695
        %v740 = vpow.pop %v739
        %v741 = vmul.f32 %v684, 1.442695
        %v742 = vpow.pop %v741
        %v743 = vmul.f32 %v685, 1.442695
        %v744 = vpow.pop %v743
        %v745 = vmul.f32 %v686, 1.442695
        %v746 = vpow.pop %v745
        %v747 = vmul.f32 %v687, 1.442695
        %v748 = vpow.pop %v747
        %v749 = vmul.f32 %v688, 1.442695
        %v750 = vpow.pop %v749
        %v751 = vmul.f32 %v689, 1.442695
        %v752 = vpow.pop %v751
        %v753 = vmul.f32 %v690, 1.442695
        %v754 = vpow.pop %v753
        %v755 = vadd.f32 %v692, %v694
        %756 = vadd.xlane.f32.xlu0 %v755
        %v757 = vpop.xlane.xlu0 %756
        %v758 = vadd.f32 %v696, %v698
        %759 = vadd.xlane.f32.xlu0 %v758
        %v760 = vpop.xlane.xlu0 %759
        %v761 = vadd.f32 %v700, %v702
        %762 = vadd.xlane.f32.xlu0 %v761
        %v763 = vpop.xlane.xlu0 %762
        %v764 = vadd.f32 %v704, %v706
        %765 = vadd.xlane.f32.xlu0 %v764
        %v766 = vpop.xlane.xlu0 %765
        %v767 = vadd.f32 %v708, %v710
        %768 = vadd.xlane.f32.xlu0 %v767
        %v769 = vpop.xlane.xlu0 %768
        %v770 = vadd.f32 %v712, %v714
        %771 = vadd.xlane.f32.xlu0 %v770
        %v772 = vpop.xlane.xlu0 %771
        %v773 = vadd.f32 %v716, %v718
        %774 = vadd.xlane.f32.xlu0 %v773
        %v775 = vpop.xlane.xlu0 %774
        %v776 = vadd.f32 %v720, %v722
        %777 = vadd.xlane.f32.xlu0 %v776
        %v778 = vpop.xlane.xlu0 %777
        %v779 = vadd.f32 %v724, %v726
        %780 = vadd.xlane.f32.xlu0 %v779
        %v781 = vpop.xlane.xlu0 %780
        %v782 = vadd.f32 %v728, %v730
        %783 = vadd.xlane.f32.xlu0 %v782
        %v784 = vpop.xlane.xlu0 %783
        %v785 = vadd.f32 %v732, %v734
        %786 = vadd.xlane.f32.xlu0 %v785
        %v787 = vpop.xlane.xlu0 %786
        %v788 = vadd.f32 %v736, %v738
        %789 = vadd.xlane.f32.xlu0 %v788
        %v790 = vpop.xlane.xlu0 %789
        %v791 = vadd.f32 %v740, %v742
        %792 = vadd.xlane.f32.xlu0 %v791
        %v793 = vpop.xlane.xlu0 %792
        %v794 = vadd.f32 %v744, %v746
        %795 = vadd.xlane.f32.xlu0 %v794
        %v796 = vpop.xlane.xlu0 %795
        %v797 = vadd.f32 %v748, %v750
        %798 = vadd.xlane.f32.xlu0 %v797
        %v799 = vpop.xlane.xlu0 %798
        %v800 = vadd.f32 %v752, %v754
        %801 = vadd.xlane.f32.xlu0 %v800
        %v802 = vpop.xlane.xlu0 %801
        %v803 = vrcp.pop %v757
        %v804 = vrcp.pop %v760
        %v805 = vrcp.pop %v763
        %v806 = vrcp.pop %v766
        %v807 = vrcp.pop %v769
        %v808 = vrcp.pop %v772
        %v809 = vrcp.pop %v775
        %v810 = vrcp.pop %v778
        %v811 = vrcp.pop %v781
        %v812 = vrcp.pop %v784
        %v813 = vrcp.pop %v787
        %v814 = vrcp.pop %v790
        %v815 = vrcp.pop %v793
        %v816 = vrcp.pop %v796
        %v817 = vrcp.pop %v799
        %v818 = vrcp.pop %v802
        %v819 = vmul.f32 %v692, %v803
        %v820 = vmul.f32 %v694, %v803
        %v821 = vmul.f32 %v696, %v804
        %v822 = vmul.f32 %v698, %v804
        %v823 = vmul.f32 %v700, %v805
        %v824 = vmul.f32 %v702, %v805
        %v825 = vmul.f32 %v704, %v806
        %v826 = vmul.f32 %v706, %v806
        %v827 = vmul.f32 %v708, %v807
        %v828 = vmul.f32 %v710, %v807
        %v829 = vmul.f32 %v712, %v808
        %v830 = vmul.f32 %v714, %v808
        %v831 = vmul.f32 %v716, %v809
        %v832 = vmul.f32 %v718, %v809
        %v833 = vmul.f32 %v720, %v810
        %v834 = vmul.f32 %v722, %v810
        %v835 = vmul.f32 %v724, %v811
        %v836 = vmul.f32 %v726, %v811
        %v837 = vmul.f32 %v728, %v812
        %v838 = vmul.f32 %v730, %v812
        %v839 = vmul.f32 %v732, %v813
        %v840 = vmul.f32 %v734, %v813
        %v841 = vmul.f32 %v736, %v814
        %v842 = vmul.f32 %v738, %v814
        %v843 = vmul.f32 %v740, %v815
        %v844 = vmul.f32 %v742, %v815
        %v845 = vmul.f32 %v744, %v816
        %v846 = vmul.f32 %v746, %v816
        %v847 = vmul.f32 %v748, %v817
        %v848 = vmul.f32 %v750, %v817
        %v849 = vmul.f32 %v752, %v818
        %v850 = vmul.f32 %v754, %v818
        %851 = vmatprep.subr.mxu0 %v820
        %852 = vmatpush1.xpose.msra.mxu0 %v819
        %853 = vmatprep.subr.mxu0 %v822
        %854 = vmatpush1.xpose.msra.mxu0 %v821
        %855 = vmatprep.subr.mxu0 %v824
        %856 = vmatpush1.xpose.msra.mxu0 %v823
        %857 = vmatprep.subr.mxu0 %v826
        %858 = vmatpush1.xpose.msra.mxu0 %v825
        %859 = vmatprep.subr.mxu0 %v828
        %860 = vmatpush1.xpose.msra.mxu0 %v827
        %861 = vmatprep.subr.mxu0 %v830
        %862 = vmatpush1.xpose.msra.mxu0 %v829
        %863 = vmatprep.subr.mxu0 %v832
        %864 = vmatpush1.xpose.msra.mxu0 %v831
        %865 = vmatprep.subr.mxu0 %v834
        %866 = vmatpush1.xpose.msra.mxu0 %v833
        %867 = vmatprep.subr.mxu0 %v836
        %868 = vmatpush1.xpose.msra.mxu0 %v835
        %869 = vmatprep.subr.mxu0 %v838
        %870 = vmatpush1.xpose.msra.mxu0 %v837
        %871 = vmatprep.subr.mxu0 %v840
        %872 = vmatpush1.xpose.msra.mxu0 %v839
        %873 = vmatprep.subr.mxu0 %v842
        %874 = vmatpush1.xpose.msra.mxu0 %v841
        %875 = vmatprep.subr.mxu0 %v844
        %876 = vmatpush1.xpose.msra.mxu0 %v843
        %877 = vmatprep.subr.mxu0 %v846
        %878 = vmatpush1.xpose.msra.mxu0 %v845
        %879 = vmatprep.subr.mxu0 %v848
        %880 = vmatpush1.xpose.msra.mxu0 %v847
        %881 = vmatprep.subr.mxu0 %v850
        %882 = vmatpush1.xpose.msra.mxu0 %v849
        %883 = vmatprep.subr.mxu0 0.0
        %884 = vmatpush1.xpose.msra.mxu0 0.0
        %885 = vmatprep.subr.mxu0 0.0
        %886 = vmatpush1.xpose.msra.mxu0 0.0
        %887 = vmatprep.subr.mxu0 0.0
        %888 = vmatpush1.xpose.msra.mxu0 0.0
        %889 = vmatprep.subr.mxu0 0.0
        %890 = vmatpush1.xpose.msra.mxu0 0.0
        %891 = vmatprep.subr.mxu0 0.0
        %892 = vmatpush1.xpose.msra.mxu0 0.0
        %893 = vmatprep.subr.mxu0 0.0
        %894 = vmatpush1.xpose.msra.mxu0 0.0
        %895 = vmatprep.subr.mxu0 0.0
        %896 = vmatpush1.xpose.msra.mxu0 0.0
        %897 = vmatprep.subr.mxu0 0.0
        %898 = vmatpush1.xpose.msra.mxu0 0.0
        %899 = vmatprep.subr.mxu0 0.0
        %900 = vmatpush1.xpose.msra.mxu0 0.0
        %901 = vmatprep.subr.mxu0 0.0
        %902 = vmatpush1.xpose.msra.mxu0 0.0
        %903 = vmatprep.subr.mxu0 0.0
        %904 = vmatpush1.xpose.msra.mxu0 0.0
        %905 = vmatprep.subr.mxu0 0.0
        %906 = vmatpush1.xpose.msra.mxu0 0.0
        %907 = vmatprep.subr.mxu0 0.0
        %908 = vmatpush1.xpose.msra.mxu0 0.0
        %909 = vmatprep.subr.mxu0 0.0
        %910 = vmatpush1.xpose.msra.mxu0 0.0
        %911 = vmatprep.subr.mxu0 0.0
        %912 = vmatpush1.xpose.msra.mxu0 0.0
        %913 = vmatprep.subr.mxu0 0.0
        %914 = vmatpush1.xpose.msra.mxu0 0.0
        %915 = vmatprep.mubr.f32.mxu0 %v366
        %916 = vmatmul.mubr.f32.gmra.mrb[0].mxu0 %v365
        %v917 = vpop.f32.mrb[0].mxu0
        %v918 = vadd.f32 0.0, %v917
        %v919 = vpop.f32.mrb[0].mxu0
        %920 = vmatprep.mubr.f32.mxu0 %v368
        %921 = vmatmul.mubr.f32.gmra.mrb[0].mxu0 %v367
        %v922 = vpop.f32.mrb[0].mxu0
        %v923 = vadd.f32 0.0, %v922
        %v924 = vpop.f32.mrb[0].mxu0
        %925 = vdwg.mxu0
        %s926 = sld [smem:[#allocation3]]
        %s927 = sadd.f32 %s926, 1.0
        %v928 = vstv %s927
        %v929 = vmul.f32 %v918, %v928
        %v930 = vmul.f32 %v923, %v928
        %v931 = vmul.f32 %v929, 256.0
        %v932 = vmul.f32 %v930, 256.0
        %v933 = vfloor.f32 %v931
        %v934 = vfloor.f32 %v932
        %v935 = vmul.f32 %v933, 0.00390625
        %v936 = vmul.f32 %v934, 0.00390625
        %937 = vst [vmem:[%s205] sm:$0xff] %v935
        %938 = vst [vmem:[%s205 + $0x8] sm:$0xff] %v936
        %s939 = sand.u32 %s130, 1
        %s940 = scalar_lea.sflag [#allocation5], %s939
        %s941 = sand.u32 %s130, 1
        %s942 = smul.addr %s941, 16
        %s943 = scalar_lea.vmem [#allocation4], %s942
        // Predicated region
        $region41: #{tpu_custom_call.1} parent=35 // pred_check
          %p944 = pneg %p140
        $region42: #{tpu_custom_call.1} parent=35 // pred_check_branch
          %946 = sbr.rel (%p944) target = $region44
        $region43: #{tpu_custom_call.1} parent=35 // pred_region
          %s948 = ssub.s32 256, 256
          %949 = vsyncadd %s940, %s948
          %s950 = smul.addr %s23, 4
          %s951 = sadd.s32 %s24, %s950
          %s952 = smul.addr %s951, 128
          %s953 = scalar_lea.hbm %s4, %s952
          %s954 = sshll.u32 %s943, 4
          %s955 = int_to_ptr.vmem [resolvable:$true] %s954
          %960 = dma.vmem_to_hbm [thread:$0]  %s955, 256, %s953, %s940, 128, 256, 8
        $region44: #{tpu_custom_call.1} parent=35 // pred_fallthru
          _
      $region36: #{tpu_custom_call.1} parent=5 // pred_fallthru
        _
      %p961 = scmp.le.s32.totalorder 2, %s14
      // Predicated region
      $region45: #{tpu_custom_call.1} parent=5 // pred_check
        %p962 = pneg %p961
      $region46: #{tpu_custom_call.1} parent=5 // pred_check_branch
        %964 = sbr.rel (%p962) target = $region48
      $region47: #{tpu_custom_call.1} parent=5 // pred_region
        %s965 = ssub.s32 %s14, 2
        // Predicated region
        $region49: #{tpu_custom_call.1} parent=47 // pred_check
          %p966 = pneg %p146
        $region50: #{tpu_custom_call.1} parent=47 // pred_check_branch
          %968 = sbr.rel (%p966) target = $region52
        $region51: #{tpu_custom_call.1} parent=47 // pred_region
          %s969 = sand.u32 %s131, 1
          %s970 = scalar_lea.sflag [#allocation5], %s969
          %s971 = sand.u32 %s131, 1
          %s972 = smul.addr %s971, 16
          %s973 = scalar_lea.vmem [#allocation4], %s972
          %974 = dma.done %s970, 256
        $region52: #{tpu_custom_call.1} parent=47 // pred_fallthru
          _
      $region48: #{tpu_custom_call.1} parent=5 // pred_fallthru
        _
    $region6: #{tpu_custom_call.1} parent=1 // loop_footer
      %s18 = sadd.s32 1, %s14
    $region7: #{tpu_custom_call.1} parent=1 // loop_footer_branch
      %13 = sbr.rel target = $region3
    $region8: #{tpu_custom_call.1} parent=1 // loop_exit
      _
    %975 = vsyncpa [#allocation5], 1
    %s976 = scalar_lea.sflag [#allocation5], 1
    %977 = vsyncpa %s976, 1

</llo_original>
